<compile_context>
chip_gen: v7x
topology: tpu7x:2x2x1
jax: 0.10.0
libtpu: 0.0.40
codegen_flags: <defaults>
</compile_context>

<pallas_src>
import functools
import math

import jax
import jax.numpy as jnp
from jax.experimental import pallas as pl
from jax.experimental.pallas import tpu as pltpu

ALPHA = 0.2          # LeakyReLU negative slope
NEG_INF = -9e15      # same mask constant as the PyTorch module


def _project_kernel(h_ref, w_ref, wh_ref, f1_ref, f2_ref, *, f_col):
    # Wh = h @ W_ext on the MXU (bf16 inputs, f32 accumulation). Columns f_col
    # and f_col+1 of W_ext hold W@a1 / W@a2, so f1/f2 come out of this matmul.
    wh = jnp.dot(h_ref[...], w_ref[...], preferred_element_type=jnp.float32)
    f1_ref[...] = wh[:, f_col:f_col + 1]          # query-side term, f32 column
    f2_ref[...] = wh[:, f_col + 1:f_col + 2]      # key-side term,   f32 column
    wh_ref[...] = wh.astype(jnp.bfloat16)


def _attention_kernel(kmap_ref, kcnt_ref, f1_ref, f2_ref, adj_ref, wh_ref,
                      out_ref, m_sc, l_sc, *, block_k, wh_resident):
    qi = pl.program_id(0)
    ki = pl.program_id(1)

    @pl.when(ki == 0)
    def _():
        m_sc[...] = jnp.full_like(m_sc, -jnp.inf)
        l_sc[...] = jnp.zeros_like(l_sc)
        out_ref[...] = jnp.zeros_like(out_ref)    # accumulate directly in out

    # Block-sparsity: only the first kcnt[qi] grid steps map to non-empty
    # adjacency blocks (index_maps repeat the last block index afterwards, so
    # no extra DMA is issued); skip all compute for the padding steps.
    @pl.when(ki < kcnt_ref[qi])
    def _():
        # e[i, j] = LeakyReLU(f1[i] + f2[j]); non-edges masked to NEG_INF.
        e = f1_ref[...] + f2_ref[...]             # [tq,1] + [1,tk] -> [tq,tk]
        e = jnp.maximum(e, ALPHA * e)             # LeakyReLU in 2 VPU ops
        e = jnp.where(adj_ref[...] != 0, e, jnp.float32(NEG_INF))

        # Online (flash-style) softmax over key blocks.
        m_prev = m_sc[...]
        m_new = jnp.maximum(m_prev, jnp.max(e, axis=1, keepdims=True))
        corr = jnp.exp(m_prev - m_new)
        p = jnp.exp(e - m_new)
        l_sc[...] = corr * l_sc[...] + jnp.sum(p, axis=1, keepdims=True)

        if wh_resident:
            # Wh is fully resident in VMEM; slice the current key block.
            start = pl.multiple_of(kmap_ref[qi, ki] * block_k, block_k)
            v = wh_ref[pl.ds(start, block_k), :]
        else:
            v = wh_ref[...]
        out_ref[...] = corr * out_ref[...] + jnp.dot(
            p.astype(jnp.bfloat16), v, preferred_element_type=jnp.float32)
        m_sc[...] = m_new

    @pl.when(ki == pl.num_programs(1) - 1)
    def _():
        l = l_sc[...]
        l_safe = jnp.where(l > 0.0, l, 1.0)       # guard padded/isolated rows
        h_prime = out_ref[...] * pl.reciprocal(l_safe, approx=True)
        # dropout(p=0) is the identity at inference -> skipped.
        # ELU (concat=True branch), expm1 for numerical accuracy.
        out_ref[...] = jnp.where(h_prime > 0, h_prime, jnp.expm1(h_prime))


def gat_layer(h, adj, W, a, *, block_q=256, block_k=256):
    """GATLayer forward. h:[N,F_in] f32, adj:[N,N], W:[F_in,F_out], a:[2*F_out,1].

    block_q must be a multiple of 8 (256 recommended), block_k a multiple of
    128 (256 recommended so the p @ Wh contraction is 256-MXU aligned).  Node
    count / feature dim are zero-padded internally; result is sliced back.
    """
    N, F_in = h.shape
    F_out = W.shape[1]

    # Lane-dense padded feature dim with room for the two folded attention
    # columns; 256-aligned when wide (v6e/v7x MXU is 2x(256x256)).
    F_pad = ((F_out + 2 + 127) // 128) * 128
    if F_pad > 128:
        F_pad = ((F_pad + 255) // 256) * 256
    n_mult = (block_q * block_k) // math.gcd(block_q, block_k)
    N_pad = ((N + n_mult - 1) // n_mult) * n_mult
    n_q = N_pad // block_q
    n_k = N_pad // block_k

    # --- operand preparation (XLA) ------------------------------------------
    h_p = jnp.pad(h, ((0, N_pad - N), (0, 0))).astype(jnp.bfloat16)
    a1 = a[:F_out, 0].astype(jnp.float32)
    a2 = a[F_out:, 0].astype(jnp.float32)
    W_ext = jnp.zeros((F_in, F_pad), jnp.float32)
    W_ext = W_ext.at[:, :F_out].set(W.astype(jnp.float32))
    W_ext = W_ext.at[:, F_out].set(W.astype(jnp.float32) @ a1)      # a1 fold
    W_ext = W_ext.at[:, F_out + 1].set(W.astype(jnp.float32) @ a2)  # a2 fold
    W_ext = W_ext.astype(jnp.bfloat16)

    # int8 adjacency mask: 4x smaller HBM stream / VMEM footprint than f32.
    adj_p = jnp.pad((adj > 0).astype(jnp.int8),
                    ((0, N_pad - N), (0, N_pad - N)))

    # Block-sparsity metadata: for each query block, the (ascending) list of
    # non-empty key blocks, padded by repeating the last valid index so the
    # pipeline never re-fetches for the skipped tail steps.
    blk_nnz = jnp.any(adj_p.reshape(n_q, block_q, n_k, block_k) != 0,
                      axis=(1, 3))                                  # [n_q,n_k]
    kcnt = jnp.sum(blk_nnz, axis=1).astype(jnp.int32)               # [n_q]
    order = jnp.argsort(jnp.logical_not(blk_nnz).astype(jnp.int32),
                        axis=1).astype(jnp.int32)                   # nnz first
    pos = jnp.minimum(jnp.arange(n_k, dtype=jnp.int32)[None, :],
                      jnp.maximum(kcnt[:, None] - 1, 0))
    kmap = jnp.take_along_axis(order, pos, axis=1).astype(jnp.int32)

    # --- Pass 1: projection + folded attention terms -------------------------
    # NOTE: W_ext's index_map is constant; if F_in*F_pad gets large, mark it
    # pipeline_mode=pl.Buffered(1) / add a K grid axis to save VMEM.
    wh, f1, f2col = pl.pallas_call(
        functools.partial(_project_kernel, f_col=F_out),
        out_shape=(jax.ShapeDtypeStruct((N_pad, F_pad), jnp.bfloat16),
                   jax.ShapeDtypeStruct((N_pad, 1), jnp.float32),
                   jax.ShapeDtypeStruct((N_pad, 1), jnp.float32)),
        grid_spec=pltpu.PrefetchScalarGridSpec(
            num_scalar_prefetch=0,
            grid=(n_q,),
            in_specs=[
                pl.BlockSpec((block_q, F_in), lambda i: (i, 0)),   # h rows
                pl.BlockSpec((F_in, F_pad), lambda i: (0, 0)),     # W_ext
            ],
            out_specs=[
                pl.BlockSpec((block_q, F_pad), lambda i: (i, 0)),  # Wh (bf16)
                pl.BlockSpec((block_q, 1), lambda i: (i, 0)),      # f1 column
                pl.BlockSpec((block_q, 1), lambda i: (i, 0)),      # f2 column
            ]),
        compiler_params=pltpu.CompilerParams(
            dimension_semantics=("parallel",),
            vmem_limit_bytes=48 * 1024 * 1024),
    )(h_p, W_ext)
    f2 = f2col.reshape(1, N_pad)   # lane-dense row; trivial XLA reshape

    # --- Pass 2: block-sparse masked softmax + attention @ Wh ----------------
    wh_bytes = N_pad * F_pad * 2
    wh_resident = wh_bytes <= 4 * 1024 * 1024   # keep V resident when it fits
    if wh_resident:
        wh_spec = pl.BlockSpec((N_pad, F_pad),
                               lambda qi, ki, kmap, kcnt: (0, 0))
    else:
        wh_spec = pl.BlockSpec((block_k, F_pad),
                               lambda qi, ki, kmap, kcnt: (kmap[qi, ki], 0))

    out = pl.pallas_call(
        functools.partial(_attention_kernel,
                          block_k=block_k, wh_resident=wh_resident),
        out_shape=jax.ShapeDtypeStruct((N_pad, F_pad), jnp.float32),
        grid_spec=pltpu.PrefetchScalarGridSpec(
            num_scalar_prefetch=2,          # kmap, kcnt -> SMEM
            grid=(n_q, n_k),
            in_specs=[
                pl.BlockSpec((block_q, 1),
                             lambda qi, ki, kmap, kcnt: (qi, 0)),           # f1
                pl.BlockSpec((1, block_k),
                             lambda qi, ki, kmap, kcnt: (0, kmap[qi, ki])), # f2
                pl.BlockSpec((block_q, block_k),
                             lambda qi, ki, kmap, kcnt: (qi, kmap[qi, ki])),# adj
                wh_spec,                                                    # Wh
            ],
            out_specs=pl.BlockSpec((block_q, F_pad),
                                   lambda qi, ki, kmap, kcnt: (qi, 0)),
            scratch_shapes=[
                pltpu.VMEM((block_q, 1), jnp.float32),      # running max
                pltpu.VMEM((block_q, 1), jnp.float32),      # running denom
            ]),
        compiler_params=pltpu.CompilerParams(
            dimension_semantics=("parallel", "arbitrary"),
            vmem_limit_bytes=48 * 1024 * 1024),   # within v7x's 64 MiB physical
    )(kmap, kcnt, f1, f2, adj_p, wh)

    return out[:N, :F_out]


def xavier_uniform(key, shape, gain):
    fan_in, fan_out = shape[0], shape[1]
    bound = gain * math.sqrt(6.0 / (fan_in + fan_out))
    return jax.random.uniform(key, shape, jnp.float32, minval=-bound, maxval=bound)


if __name__ == "__main__":
    key = jax.random.PRNGKey(0)
    k_h, k_adj, k_w, k_a = jax.random.split(key, 4)

    N, F_IN, F_OUT = 8, 16, 32

    # Deterministic params (matches nn.init.xavier_uniform_(gain=1.414)).
    W = xavier_uniform(k_w, (F_IN, F_OUT), gain=1.414)
    a = xavier_uniform(k_a, (2 * F_OUT, 1), gain=1.414)

    # Example inputs: node features + sparse-ish adjacency with self loops.
    h = jax.random.normal(k_h, (N, F_IN), jnp.float32)
    adj = (jax.random.uniform(k_adj, (N, N)) > 0.5).astype(jnp.float32)
    adj = jnp.maximum(adj, jnp.eye(N, dtype=jnp.float32))

    out = gat_layer(h, adj, W, a)
    jax.block_until_ready(out)

    # Pure-JAX reference with matching bf16 matmul precision.
    Wh = jnp.dot(h.astype(jnp.bfloat16), W.astype(jnp.bfloat16),
                 preferred_element_type=jnp.float32)
    e = (Wh @ a[:F_OUT]) + (Wh @ a[F_OUT:]).T
    e = jnp.where(e > 0, e, ALPHA * e)
    att = jnp.where(adj > 0, e, jnp.full_like(e, NEG_INF))
    att = jax.nn.softmax(att, axis=1)
    ref = jax.nn.elu(jnp.dot(att.astype(jnp.bfloat16), Wh.astype(jnp.bfloat16),
                             preferred_element_type=jnp.float32))
    assert jnp.allclose(out, ref, atol=3e-2, rtol=3e-2), "mismatch vs reference"

    print("KERNEL_OK")
</pallas_src>

<mosaic_0001>
module attributes {stable_mosaic.version = 11 : i64} {
  func.func @_project_kernel(%arg0: i32, %arg1: memref<256x16xbf16, #tpu.memory_space<vmem>>, %arg2: memref<16x128xbf16, #tpu.memory_space<vmem>>, %arg3: memref<256x128xbf16, #tpu.memory_space<vmem>>, %arg4: memref<256x1xf32, #tpu.memory_space<vmem>>, %arg5: memref<256x1xf32, #tpu.memory_space<vmem>>) attributes {dimension_semantics = [#tpu.dimension_semantics<parallel>], iteration_bounds = array<i64: 1>, scalar_prefetch = 0 : i64, scratch_operands = 0 : i64, tpu.core_type = #tpu.core_type<tc>, window_params = [{transform_indices = @transform_0, window_bounds = array<i64: 256, 16>}, {pipeline_mode = #tpu.pipeline_mode<synchronous>, transform_indices = @transform_1, window_bounds = array<i64: 16, 128>}, {transform_indices = @transform_2, window_bounds = array<i64: 256, 128>}, {transform_indices = @transform_3, window_bounds = array<i64: 256, 1>}, {transform_indices = @transform_4, window_bounds = array<i64: 256, 1>}]} {
    %c0 = arith.constant 0 : index
    %c0_0 = arith.constant 0 : index
    %0 = vector.load %arg1[%c0, %c0_0] : memref<256x16xbf16, #tpu.memory_space<vmem>>, vector<256x16xbf16>
    %c0_1 = arith.constant 0 : index
    %c0_2 = arith.constant 0 : index
    %1 = vector.load %arg2[%c0_1, %c0_2] : memref<16x128xbf16, #tpu.memory_space<vmem>>, vector<16x128xbf16>
    %cst = arith.constant dense<0.000000e+00> : vector<256x128xf32>
    %2 = tpu.matmul %0, %1, %cst {dimension_numbers = #tpu.dot_dimension_numbers<[1], [0], [0], [1], [0, 0, 1, 1], [], []>} : vector<256x16xbf16>, vector<16x128xbf16>, vector<256x128xf32> -> vector<256x128xf32>
    %3 = vector.extract_strided_slice %2 {offsets = [0, 32], sizes = [256, 1], strides = [1, 1]} : vector<256x128xf32> to vector<256x1xf32>
    %c0_3 = arith.constant 0 : index
    %c0_4 = arith.constant 0 : index
    %4 = vector.load %arg4[%c0_3, %c0_4] : memref<256x1xf32, #tpu.memory_space<vmem>>, vector<256x1xf32>
    tpu.vector_store %arg4[%c0_3, %c0_4], %3 {strides = array<i32>} : memref<256x1xf32, #tpu.memory_space<vmem>>, vector<256x1xf32>,
    %5 = vector.extract_strided_slice %2 {offsets = [0, 33], sizes = [256, 1], strides = [1, 1]} : vector<256x128xf32> to vector<256x1xf32>
    %c0_5 = arith.constant 0 : index
    %c0_6 = arith.constant 0 : index
    %6 = vector.load %arg5[%c0_5, %c0_6] : memref<256x1xf32, #tpu.memory_space<vmem>>, vector<256x1xf32>
    tpu.vector_store %arg5[%c0_5, %c0_6], %5 {strides = array<i32>} : memref<256x1xf32, #tpu.memory_space<vmem>>, vector<256x1xf32>,
    %7 = arith.truncf %2 : vector<256x128xf32> to vector<256x128xbf16>
    %c0_7 = arith.constant 0 : index
    %c0_8 = arith.constant 0 : index
    %8 = vector.load %arg3[%c0_7, %c0_8] : memref<256x128xbf16, #tpu.memory_space<vmem>>, vector<256x128xbf16>
    tpu.vector_store %arg3[%c0_7, %c0_8], %7 {strides = array<i32>} : memref<256x128xbf16, #tpu.memory_space<vmem>>, vector<256x128xbf16>,
    return
  }
  func.func @transform_0(%arg0: i32) -> (i32, i32) {
    %c0_i32 = arith.constant 0 : i32
    %c0_i32_0 = arith.constant 0 : i32
    return %arg0, %c0_i32 : i32, i32
  }
  func.func @transform_1(%arg0: i32) -> (i32, i32) {
    %c0_i32 = arith.constant 0 : i32
    %c0_i32_0 = arith.constant 0 : i32
    %c0_i32_1 = arith.constant 0 : i32
    return %c0_i32, %c0_i32_0 : i32, i32
  }
  func.func @transform_2(%arg0: i32) -> (i32, i32) {
    %c0_i32 = arith.constant 0 : i32
    %c0_i32_0 = arith.constant 0 : i32
    return %arg0, %c0_i32 : i32, i32
  }
  func.func @transform_3(%arg0: i32) -> (i32, i32) {
    %c0_i32 = arith.constant 0 : i32
    %c0_i32_0 = arith.constant 0 : i32
    return %arg0, %c0_i32 : i32, i32
  }
  func.func @transform_4(%arg0: i32) -> (i32, i32) {
    %c0_i32 = arith.constant 0 : i32
    %c0_i32_0 = arith.constant 0 : i32
    return %arg0, %c0_i32 : i32, i32
  }
}

</mosaic_0001>

<llo_original>
// kernel: tpu_custom_call.1
$region0: #{tpu_custom_call.1}
  #allocation0 [shape = 'u32[]', space=smem, size = 0x4, offset = 0x4, fixed_abs, tag = 'smem constant byte address 0x4 - core index']
  #allocation1 [shape = 'u32[144,128]{1,0:T(1,128)}', space=vmem, size = 0x12000, scoped, tag = 'internal scratch']
  %s0 = inlined_call_operand.vmem [shape: bf16[256,16], index: 0, kind: input, shape index: {}]
  %s1 = inlined_call_operand.vmem [shape: bf16[16,128], index: 1, kind: input, shape index: {}]
  %s2 = inlined_call_operand.hbm [shape: bf16[256,128], index: 2, kind: output, shape index: {0}]
  %s3 = inlined_call_operand.vmem [shape: f32[256,1], index: 3, kind: output, shape index: {1}]
  %s4 = inlined_call_operand.vmem [shape: f32[256,1], index: 4, kind: output, shape index: {2}]
  %5 = xla_tuple %s2, %s3, %s4
  %s6 = sld [smem:[#allocation0]]
  $region34: #{tpu_custom_call.1} parent=0
    _
  %s8 = ssub.s32 1, %s6
  %s9 = scalar_select 0, %s8, %s6
  $region1: #{tpu_custom_call.1} parent=0
    #allocation2 [shape = 'u8[65536]{0}', space=vmem, size = 0x10000, scoped, tag = 'output window, operand 0, single buffered']
    #allocation3 [shape = 's32[1]{0}', space=sflag, size = 0x4, scoped, tag = 'scoped memory for tpu_custom_call.1']
    %10 = vsyncpa [#allocation3], 0
    // Predicated region
    $region2: #{tpu_custom_call.1} parent=1 // pred_check
      _
    $region3: #{tpu_custom_call.1} parent=1 // pred_check_branch
      %12 = sbr.rel (0) target = $region5
    $region4: #{tpu_custom_call.1} parent=1 // pred_region
      _
    $region5: #{tpu_custom_call.1} parent=1 // pred_fallthru
      _
    // Predicated region
    $region6: #{tpu_custom_call.1} parent=1 // pred_check
      _
    $region7: #{tpu_custom_call.1} parent=1 // pred_check_branch
      %14 = sbr.rel (0) target = $region9
    $region8: #{tpu_custom_call.1} parent=1 // pred_region
      _
    $region9: #{tpu_custom_call.1} parent=1 // pred_fallthru
      _
    %v16 = vld [vmem:[%s0] sm:$0xf]
    %v17 = vld [vmem:[%s0 + $0x4] sm:$0xf]
    %v18 = vld [vmem:[%s0 + $0x8] sm:$0xf]
    %v19 = vld [vmem:[%s0 + $0xc] sm:$0xf]
    %v20 = vld [vmem:[%s0 + $0x10] sm:$0xf]
    %v21 = vld [vmem:[%s0 + $0x14] sm:$0xf]
    %v22 = vld [vmem:[%s0 + $0x18] sm:$0xf]
    %v23 = vld [vmem:[%s0 + $0x1c] sm:$0xf]
    %v24 = vld [vmem:[%s0 + $0x20] sm:$0xf]
    %v25 = vld [vmem:[%s0 + $0x24] sm:$0xf]
    %v26 = vld [vmem:[%s0 + $0x28] sm:$0xf]
    %v27 = vld [vmem:[%s0 + $0x2c] sm:$0xf]
    %v28 = vld [vmem:[%s0 + $0x30] sm:$0xf]
    %v29 = vld [vmem:[%s0 + $0x34] sm:$0xf]
    %v30 = vld [vmem:[%s0 + $0x38] sm:$0xf]
    %v31 = vld [vmem:[%s0 + $0x3c] sm:$0xf]
    %v32 = vld [vmem:[%s0 + $0x40] sm:$0xf]
    %v33 = vld [vmem:[%s0 + $0x44] sm:$0xf]
    %v34 = vld [vmem:[%s0 + $0x48] sm:$0xf]
    %v35 = vld [vmem:[%s0 + $0x4c] sm:$0xf]
    %v36 = vld [vmem:[%s0 + $0x50] sm:$0xf]
    %v37 = vld [vmem:[%s0 + $0x54] sm:$0xf]
    %v38 = vld [vmem:[%s0 + $0x58] sm:$0xf]
    %v39 = vld [vmem:[%s0 + $0x5c] sm:$0xf]
    %v40 = vld [vmem:[%s0 + $0x60] sm:$0xf]
    %v41 = vld [vmem:[%s0 + $0x64] sm:$0xf]
    %v42 = vld [vmem:[%s0 + $0x68] sm:$0xf]
    %v43 = vld [vmem:[%s0 + $0x6c] sm:$0xf]
    %v44 = vld [vmem:[%s0 + $0x70] sm:$0xf]
    %v45 = vld [vmem:[%s0 + $0x74] sm:$0xf]
    %v46 = vld [vmem:[%s0 + $0x78] sm:$0xf]
    %v47 = vld [vmem:[%s0 + $0x7c] sm:$0xf]
    %v48 = vld [vmem:[%s1] sm:$0xf]
    %v49 = vld [vmem:[%s1 + $0x4] sm:$0xf]
    %v82 = vunpack.c.l.b16 %v16
    %v83 = vunpack.c.l.b16 %v17
    %v84 = vunpack.c.l.b16 %v18
    %v85 = vunpack.c.l.b16 %v19
    %v86 = vunpack.c.l.b16 %v20
    %v87 = vunpack.c.l.b16 %v21
    %v88 = vunpack.c.l.b16 %v22
    %v89 = vunpack.c.l.b16 %v23
    %v90 = vunpack.c.l.b16 %v24
    %v91 = vunpack.c.l.b16 %v25
    %v92 = vunpack.c.l.b16 %v26
    %v93 = vunpack.c.l.b16 %v27
    %v94 = vunpack.c.l.b16 %v28
    %v95 = vunpack.c.l.b16 %v29
    %v96 = vunpack.c.l.b16 %v30
    %v97 = vunpack.c.l.b16 %v31
    %v98 = vunpack.c.l.b16 %v32
    %v99 = vunpack.c.l.b16 %v33
    %v100 = vunpack.c.l.b16 %v34
    %v101 = vunpack.c.l.b16 %v35
    %v102 = vunpack.c.l.b16 %v36
    %v103 = vunpack.c.l.b16 %v37
    %v104 = vunpack.c.l.b16 %v38
    %v105 = vunpack.c.l.b16 %v39
    %v106 = vunpack.c.l.b16 %v40
    %v107 = vunpack.c.l.b16 %v41
    %v108 = vunpack.c.l.b16 %v42
    %v109 = vunpack.c.l.b16 %v43
    %v110 = vunpack.c.l.b16 %v44
    %v111 = vunpack.c.l.b16 %v45
    %v112 = vunpack.c.l.b16 %v46
    %v113 = vunpack.c.l.b16 %v47
    %v114 = vpack.c.b16 %v83, %v82
    %v115 = vpack.c.b16 %v85, %v84
    %v116 = vpack.c.b16 %v87, %v86
    %v117 = vpack.c.b16 %v89, %v88
    %v118 = vpack.c.b16 %v91, %v90
    %v119 = vpack.c.b16 %v93, %v92
    %v120 = vpack.c.b16 %v95, %v94
    %v121 = vpack.c.b16 %v97, %v96
    %v122 = vpack.c.b16 %v99, %v98
    %v123 = vpack.c.b16 %v101, %v100
    %v124 = vpack.c.b16 %v103, %v102
    %v125 = vpack.c.b16 %v105, %v104
    %v126 = vpack.c.b16 %v107, %v106
    %v127 = vpack.c.b16 %v109, %v108
    %v128 = vpack.c.b16 %v111, %v110
    %v129 = vpack.c.b16 %v113, %v112
    %v132 = vunpack.c.l.b16 %v48
    %v133 = vunpack.c.l.b16 %v49
    %v134 = vpack.c.b16 %v133, %v132
    %vm136 = vcmask 130048
    %v138 = vsel %vm136, %v114, 0
    %v141 = vsel %vm136, %v115, 0
    %v144 = vsel %vm136, %v116, 0
    %v147 = vsel %vm136, %v117, 0
    %v150 = vsel %vm136, %v118, 0
    %v153 = vsel %vm136, %v119, 0
    %v156 = vsel %vm136, %v120, 0
    %v159 = vsel %vm136, %v121, 0
    %v162 = vsel %vm136, %v122, 0
    %v165 = vsel %vm136, %v123, 0
    %v168 = vsel %vm136, %v124, 0
    %v171 = vsel %vm136, %v125, 0
    %v174 = vsel %vm136, %v126, 0
    %v177 = vsel %vm136, %v127, 0
    %v180 = vsel %vm136, %v128, 0
    %v183 = vsel %vm136, %v129, 0
    %185 = vmatprep.subr.bf16.mxu0 0
    %186 = vmatpush1.bf16.msra.mxu0 %v134
    %187 = vmatprep.subr.bf16.mxu0 0
    %188 = vmatpush1.bf16.msra.mxu0 0
    %189 = vmatprep.subr.bf16.mxu0 0
    %190 = vmatpush1.bf16.msra.mxu0 0
    %191 = vmatprep.subr.bf16.mxu0 0
    %192 = vmatpush1.bf16.msra.mxu0 0
    %193 = vmatprep.subr.bf16.mxu0 0
    %194 = vmatpush1.bf16.msra.mxu0 0
    %195 = vmatprep.subr.bf16.mxu0 0
    %196 = vmatpush1.bf16.msra.mxu0 0
    %197 = vmatprep.subr.bf16.mxu0 0
    %198 = vmatpush1.bf16.msra.mxu0 0
    %199 = vmatprep.subr.bf16.mxu0 0
    %200 = vmatpush1.bf16.msra.mxu0 0
    %201 = vmatprep.subr.bf16.mxu0 0
    %202 = vmatpush1.bf16.msra.mxu0 0
    %203 = vmatprep.subr.bf16.mxu0 0
    %204 = vmatpush1.bf16.msra.mxu0 0
    %205 = vmatprep.subr.bf16.mxu0 0
    %206 = vmatpush1.bf16.msra.mxu0 0
    %207 = vmatprep.subr.bf16.mxu0 0
    %208 = vmatpush1.bf16.msra.mxu0 0
    %209 = vmatprep.subr.bf16.mxu0 0
    %210 = vmatpush1.bf16.msra.mxu0 0
    %211 = vmatprep.subr.bf16.mxu0 0
    %212 = vmatpush1.bf16.msra.mxu0 0
    %213 = vmatprep.subr.bf16.mxu0 0
    %214 = vmatpush1.bf16.msra.mxu0 0
    %215 = vmatprep.subr.bf16.mxu0 0
    %216 = vmatpush1.bf16.msra.mxu0 0
    %217 = vmatprep.mubr.bf16.mxu0 0
    %218 = vmatmul.mubr.bf16.gmra.mrb[0].mxu0 %v138
    %v219 = vpop.f32.mrb[0].mxu0
    %v220 = vadd.f32 0.0, %v219
    %v221 = vpop.f32.mrb[0].mxu0
    %v222 = vpop.f32.mrb[0].mxu0
    %v223 = vadd.f32 0.0, %v222
    %v224 = vpop.f32.mrb[0].mxu0
    %225 = vmatprep.mubr.bf16.mxu0 0
    %226 = vmatmul.mubr.bf16.gmra.mrb[0].mxu0 %v141
    %v227 = vpop.f32.mrb[0].mxu0
    %v228 = vadd.f32 0.0, %v227
    %v229 = vpop.f32.mrb[0].mxu0
    %v230 = vpop.f32.mrb[0].mxu0
    %v231 = vadd.f32 0.0, %v230
    %v232 = vpop.f32.mrb[0].mxu0
    %233 = vmatprep.mubr.bf16.mxu0 0
    %234 = vmatmul.mubr.bf16.gmra.mrb[0].mxu0 %v144
    %v235 = vpop.f32.mrb[0].mxu0
    %v236 = vadd.f32 0.0, %v235
    %v237 = vpop.f32.mrb[0].mxu0
    %v238 = vpop.f32.mrb[0].mxu0
    %v239 = vadd.f32 0.0, %v238
    %v240 = vpop.f32.mrb[0].mxu0
    %241 = vmatprep.mubr.bf16.mxu0 0
    %242 = vmatmul.mubr.bf16.gmra.mrb[0].mxu0 %v147
    %v243 = vpop.f32.mrb[0].mxu0
    %v244 = vadd.f32 0.0, %v243
    %v245 = vpop.f32.mrb[0].mxu0
    %v246 = vpop.f32.mrb[0].mxu0
    %v247 = vadd.f32 0.0, %v246
    %v248 = vpop.f32.mrb[0].mxu0
    %249 = vmatprep.mubr.bf16.mxu0 0
    %250 = vmatmul.mubr.bf16.gmra.mrb[0].mxu0 %v150
    %v251 = vpop.f32.mrb[0].mxu0
    %v252 = vadd.f32 0.0, %v251
    %v253 = vpop.f32.mrb[0].mxu0
    %v254 = vpop.f32.mrb[0].mxu0
    %v255 = vadd.f32 0.0, %v254
    %v256 = vpop.f32.mrb[0].mxu0
    %257 = vmatprep.mubr.bf16.mxu0 0
    %258 = vmatmul.mubr.bf16.gmra.mrb[0].mxu0 %v153
    %v259 = vpop.f32.mrb[0].mxu0
    %v260 = vadd.f32 0.0, %v259
    %v261 = vpop.f32.mrb[0].mxu0
    %v262 = vpop.f32.mrb[0].mxu0
    %v263 = vadd.f32 0.0, %v262
    %v264 = vpop.f32.mrb[0].mxu0
    %265 = vmatprep.mubr.bf16.mxu0 0
    %266 = vmatmul.mubr.bf16.gmra.mrb[0].mxu0 %v156
    %v267 = vpop.f32.mrb[0].mxu0
    %v268 = vadd.f32 0.0, %v267
    %v269 = vpop.f32.mrb[0].mxu0
    %v270 = vpop.f32.mrb[0].mxu0
    %v271 = vadd.f32 0.0, %v270
    %v272 = vpop.f32.mrb[0].mxu0
    %273 = vmatprep.mubr.bf16.mxu0 0
    %274 = vmatmul.mubr.bf16.gmra.mrb[0].mxu0 %v159
    %v275 = vpop.f32.mrb[0].mxu0
    %v276 = vadd.f32 0.0, %v275
    %v277 = vpop.f32.mrb[0].mxu0
    %v278 = vpop.f32.mrb[0].mxu0
    %v279 = vadd.f32 0.0, %v278
    %v280 = vpop.f32.mrb[0].mxu0
    %281 = vmatprep.mubr.bf16.mxu0 0
    %282 = vmatmul.mubr.bf16.gmra.mrb[0].mxu0 %v162
    %v283 = vpop.f32.mrb[0].mxu0
    %v284 = vadd.f32 0.0, %v283
    %v285 = vpop.f32.mrb[0].mxu0
    %v286 = vpop.f32.mrb[0].mxu0
    %v287 = vadd.f32 0.0, %v286
    %v288 = vpop.f32.mrb[0].mxu0
    %289 = vmatprep.mubr.bf16.mxu0 0
    %290 = vmatmul.mubr.bf16.gmra.mrb[0].mxu0 %v165
    %v291 = vpop.f32.mrb[0].mxu0
    %v292 = vadd.f32 0.0, %v291
    %v293 = vpop.f32.mrb[0].mxu0
    %v294 = vpop.f32.mrb[0].mxu0
    %v295 = vadd.f32 0.0, %v294
    %v296 = vpop.f32.mrb[0].mxu0
    %297 = vmatprep.mubr.bf16.mxu0 0
    %298 = vmatmul.mubr.bf16.gmra.mrb[0].mxu0 %v168
    %v299 = vpop.f32.mrb[0].mxu0
    %v300 = vadd.f32 0.0, %v299
    %v301 = vpop.f32.mrb[0].mxu0
    %v302 = vpop.f32.mrb[0].mxu0
    %v303 = vadd.f32 0.0, %v302
    %v304 = vpop.f32.mrb[0].mxu0
    %305 = vmatprep.mubr.bf16.mxu0 0
    %306 = vmatmul.mubr.bf16.gmra.mrb[0].mxu0 %v171
    %v307 = vpop.f32.mrb[0].mxu0
    %v308 = vadd.f32 0.0, %v307
    %v309 = vpop.f32.mrb[0].mxu0
    %v310 = vpop.f32.mrb[0].mxu0
    %v311 = vadd.f32 0.0, %v310
    %v312 = vpop.f32.mrb[0].mxu0
    %313 = vmatprep.mubr.bf16.mxu0 0
    %314 = vmatmul.mubr.bf16.gmra.mrb[0].mxu0 %v174
    %v315 = vpop.f32.mrb[0].mxu0
    %v316 = vadd.f32 0.0, %v315
    %v317 = vpop.f32.mrb[0].mxu0
    %v318 = vpop.f32.mrb[0].mxu0
    %v319 = vadd.f32 0.0, %v318
    %v320 = vpop.f32.mrb[0].mxu0
    %321 = vmatprep.mubr.bf16.mxu0 0
    %322 = vmatmul.mubr.bf16.gmra.mrb[0].mxu0 %v177
    %v323 = vpop.f32.mrb[0].mxu0
    %v324 = vadd.f32 0.0, %v323
    %v325 = vpop.f32.mrb[0].mxu0
    %v326 = vpop.f32.mrb[0].mxu0
    %v327 = vadd.f32 0.0, %v326
    %v328 = vpop.f32.mrb[0].mxu0
    %329 = vmatprep.mubr.bf16.mxu0 0
    %330 = vmatmul.mubr.bf16.gmra.mrb[0].mxu0 %v180
    %v331 = vpop.f32.mrb[0].mxu0
    %v332 = vadd.f32 0.0, %v331
    %v333 = vpop.f32.mrb[0].mxu0
    %v334 = vpop.f32.mrb[0].mxu0
    %v335 = vadd.f32 0.0, %v334
    %v336 = vpop.f32.mrb[0].mxu0
    %337 = vmatprep.mubr.bf16.mxu0 0
    %338 = vmatmul.mubr.bf16.gmra.mrb[0].mxu0 %v183
    %v339 = vpop.f32.mrb[0].mxu0
    %v340 = vadd.f32 0.0, %v339
    %v341 = vpop.f32.mrb[0].mxu0
    %v342 = vpop.f32.mrb[0].mxu0
    %v343 = vadd.f32 0.0, %v342
    %v344 = vpop.f32.mrb[0].mxu0
    %345 = vdwg.mxu0
    %378 = vrot.lane.b32.xlu0 %v220, 96
    %v379 = vpop.permute.xlu0 %378
    %380 = vrot.lane.b32.xlu0 %v223, 96
    %v381 = vpop.permute.xlu0 %380
    %382 = vrot.lane.b32.xlu0 %v228, 96
    %v383 = vpop.permute.xlu0 %382
    %384 = vrot.lane.b32.xlu0 %v231, 96
    %v385 = vpop.permute.xlu0 %384
    %386 = vrot.lane.b32.xlu0 %v236, 96
    %v387 = vpop.permute.xlu0 %386
    %388 = vrot.lane.b32.xlu0 %v239, 96
    %v389 = vpop.permute.xlu0 %388
    %390 = vrot.lane.b32.xlu0 %v244, 96
    %v391 = vpop.permute.xlu0 %390
    %392 = vrot.lane.b32.xlu0 %v247, 96
    %v393 = vpop.permute.xlu0 %392
    %394 = vrot.lane.b32.xlu0 %v252, 96
    %v395 = vpop.permute.xlu0 %394
    %396 = vrot.lane.b32.xlu0 %v255, 96
    %v397 = vpop.permute.xlu0 %396
    %398 = vrot.lane.b32.xlu0 %v260, 96
    %v399 = vpop.permute.xlu0 %398
    %400 = vrot.lane.b32.xlu0 %v263, 96
    %v401 = vpop.permute.xlu0 %400
    %402 = vrot.lane.b32.xlu0 %v268, 96
    %v403 = vpop.permute.xlu0 %402
    %404 = vrot.lane.b32.xlu0 %v271, 96
    %v405 = vpop.permute.xlu0 %404
    %406 = vrot.lane.b32.xlu0 %v276, 96
    %v407 = vpop.permute.xlu0 %406
    %408 = vrot.lane.b32.xlu0 %v279, 96
    %v409 = vpop.permute.xlu0 %408
    %410 = vrot.lane.b32.xlu0 %v284, 96
    %v411 = vpop.permute.xlu0 %410
    %412 = vrot.lane.b32.xlu0 %v287, 96
    %v413 = vpop.permute.xlu0 %412
    %414 = vrot.lane.b32.xlu0 %v292, 96
    %v415 = vpop.permute.xlu0 %414
    %416 = vrot.lane.b32.xlu0 %v295, 96
    %v417 = vpop.permute.xlu0 %416
    %418 = vrot.lane.b32.xlu0 %v300, 96
    %v419 = vpop.permute.xlu0 %418
    %420 = vrot.lane.b32.xlu0 %v303, 96
    %v421 = vpop.permute.xlu0 %420
    %422 = vrot.lane.b32.xlu0 %v308, 96
    %v423 = vpop.permute.xlu0 %422
    %424 = vrot.lane.b32.xlu0 %v311, 96
    %v425 = vpop.permute.xlu0 %424
    %426 = vrot.lane.b32.xlu0 %v316, 96
    %v427 = vpop.permute.xlu0 %426
    %428 = vrot.lane.b32.xlu0 %v319, 96
    %v429 = vpop.permute.xlu0 %428
    %430 = vrot.lane.b32.xlu0 %v324, 96
    %v431 = vpop.permute.xlu0 %430
    %432 = vrot.lane.b32.xlu0 %v327, 96
    %v433 = vpop.permute.xlu0 %432
    %434 = vrot.lane.b32.xlu0 %v332, 96
    %v435 = vpop.permute.xlu0 %434
    %436 = vrot.lane.b32.xlu0 %v335, 96
    %v437 = vpop.permute.xlu0 %436
    %438 = vrot.lane.b32.xlu0 %v340, 96
    %v439 = vpop.permute.xlu0 %438
    %440 = vrot.lane.b32.xlu0 %v343, 96
    %v441 = vpop.permute.xlu0 %440
    %vm474 = vcmask 7168
    %475 = vst.msk [vmem:[%s3] sm:$0xff] %vm474, %v379
    %476 = vst.msk [vmem:[%s3 + $0x8] sm:$0xff] %vm474, %v381
    %477 = vst.msk [vmem:[%s3 + $0x10] sm:$0xff] %vm474, %v383
    %478 = vst.msk [vmem:[%s3 + $0x18] sm:$0xff] %vm474, %v385
    %479 = vst.msk [vmem:[%s3 + $0x20] sm:$0xff] %vm474, %v387
    %480 = vst.msk [vmem:[%s3 + $0x28] sm:$0xff] %vm474, %v389
    %481 = vst.msk [vmem:[%s3 + $0x30] sm:$0xff] %vm474, %v391
    %482 = vst.msk [vmem:[%s3 + $0x38] sm:$0xff] %vm474, %v393
    %483 = vst.msk [vmem:[%s3 + $0x40] sm:$0xff] %vm474, %v395
    %484 = vst.msk [vmem:[%s3 + $0x48] sm:$0xff] %vm474, %v397
    %485 = vst.msk [vmem:[%s3 + $0x50] sm:$0xff] %vm474, %v399
    %486 = vst.msk [vmem:[%s3 + $0x58] sm:$0xff] %vm474, %v401
    %487 = vst.msk [vmem:[%s3 + $0x60] sm:$0xff] %vm474, %v403
    %488 = vst.msk [vmem:[%s3 + $0x68] sm:$0xff] %vm474, %v405
    %489 = vst.msk [vmem:[%s3 + $0x70] sm:$0xff] %vm474, %v407
    %490 = vst.msk [vmem:[%s3 + $0x78] sm:$0xff] %vm474, %v409
    %491 = vst.msk [vmem:[%s3 + $0x80] sm:$0xff] %vm474, %v411
    %492 = vst.msk [vmem:[%s3 + $0x88] sm:$0xff] %vm474, %v413
    %493 = vst.msk [vmem:[%s3 + $0x90] sm:$0xff] %vm474, %v415
    %494 = vst.msk [vmem:[%s3 + $0x98] sm:$0xff] %vm474, %v417
    %495 = vst.msk [vmem:[%s3 + $0xa0] sm:$0xff] %vm474, %v419
    %496 = vst.msk [vmem:[%s3 + $0xa8] sm:$0xff] %vm474, %v421
    %497 = vst.msk [vmem:[%s3 + $0xb0] sm:$0xff] %vm474, %v423
    %498 = vst.msk [vmem:[%s3 + $0xb8] sm:$0xff] %vm474, %v425
    %499 = vst.msk [vmem:[%s3 + $0xc0] sm:$0xff] %vm474, %v427
    %500 = vst.msk [vmem:[%s3 + $0xc8] sm:$0xff] %vm474, %v429
    %501 = vst.msk [vmem:[%s3 + $0xd0] sm:$0xff] %vm474, %v431
    %502 = vst.msk [vmem:[%s3 + $0xd8] sm:$0xff] %vm474, %v433
    %503 = vst.msk [vmem:[%s3 + $0xe0] sm:$0xff] %vm474, %v435
    %504 = vst.msk [vmem:[%s3 + $0xe8] sm:$0xff] %vm474, %v437
    %505 = vst.msk [vmem:[%s3 + $0xf0] sm:$0xff] %vm474, %v439
    %506 = vst.msk [vmem:[%s3 + $0xf8] sm:$0xff] %vm474, %v441
    %507 = vrot.lane.b32.xlu0 %v220, 95
    %v508 = vpop.permute.xlu0 %507
    %509 = vrot.lane.b32.xlu0 %v223, 95
    %v510 = vpop.permute.xlu0 %509
    %511 = vrot.lane.b32.xlu0 %v228, 95
    %v512 = vpop.permute.xlu0 %511
    %513 = vrot.lane.b32.xlu0 %v231, 95
    %v514 = vpop.permute.xlu0 %513
    %515 = vrot.lane.b32.xlu0 %v236, 95
    %v516 = vpop.permute.xlu0 %515
    %517 = vrot.lane.b32.xlu0 %v239, 95
    %v518 = vpop.permute.xlu0 %517
    %519 = vrot.lane.b32.xlu0 %v244, 95
    %v520 = vpop.permute.xlu0 %519
    %521 = vrot.lane.b32.xlu0 %v247, 95
    %v522 = vpop.permute.xlu0 %521
    %523 = vrot.lane.b32.xlu0 %v252, 95
    %v524 = vpop.permute.xlu0 %523
    %525 = vrot.lane.b32.xlu0 %v255, 95
    %v526 = vpop.permute.xlu0 %525
    %527 = vrot.lane.b32.xlu0 %v260, 95
    %v528 = vpop.permute.xlu0 %527
    %529 = vrot.lane.b32.xlu0 %v263, 95
    %v530 = vpop.permute.xlu0 %529
    %531 = vrot.lane.b32.xlu0 %v268, 95
    %v532 = vpop.permute.xlu0 %531
    %533 = vrot.lane.b32.xlu0 %v271, 95
    %v534 = vpop.permute.xlu0 %533
    %535 = vrot.lane.b32.xlu0 %v276, 95
    %v536 = vpop.permute.xlu0 %535
    %537 = vrot.lane.b32.xlu0 %v279, 95
    %v538 = vpop.permute.xlu0 %537
    %539 = vrot.lane.b32.xlu0 %v284, 95
    %v540 = vpop.permute.xlu0 %539
    %541 = vrot.lane.b32.xlu0 %v287, 95
    %v542 = vpop.permute.xlu0 %541
    %543 = vrot.lane.b32.xlu0 %v292, 95
    %v544 = vpop.permute.xlu0 %543
    %545 = vrot.lane.b32.xlu0 %v295, 95
    %v546 = vpop.permute.xlu0 %545
    %547 = vrot.lane.b32.xlu0 %v300, 95
    %v548 = vpop.permute.xlu0 %547
    %549 = vrot.lane.b32.xlu0 %v303, 95
    %v550 = vpop.permute.xlu0 %549
    %551 = vrot.lane.b32.xlu0 %v308, 95
    %v552 = vpop.permute.xlu0 %551
    %553 = vrot.lane.b32.xlu0 %v311, 95
    %v554 = vpop.permute.xlu0 %553
    %555 = vrot.lane.b32.xlu0 %v316, 95
    %v556 = vpop.permute.xlu0 %555
    %557 = vrot.lane.b32.xlu0 %v319, 95
    %v558 = vpop.permute.xlu0 %557
    %559 = vrot.lane.b32.xlu0 %v324, 95
    %v560 = vpop.permute.xlu0 %559
    %561 = vrot.lane.b32.xlu0 %v327, 95
    %v562 = vpop.permute.xlu0 %561
    %563 = vrot.lane.b32.xlu0 %v332, 95
    %v564 = vpop.permute.xlu0 %563
    %565 = vrot.lane.b32.xlu0 %v335, 95
    %v566 = vpop.permute.xlu0 %565
    %567 = vrot.lane.b32.xlu0 %v340, 95
    %v568 = vpop.permute.xlu0 %567
    %569 = vrot.lane.b32.xlu0 %v343, 95
    %v570 = vpop.permute.xlu0 %569
    %603 = vst.msk [vmem:[%s4] sm:$0xff] %vm474, %v508
    %604 = vst.msk [vmem:[%s4 + $0x8] sm:$0xff] %vm474, %v510
    %605 = vst.msk [vmem:[%s4 + $0x10] sm:$0xff] %vm474, %v512
    %606 = vst.msk [vmem:[%s4 + $0x18] sm:$0xff] %vm474, %v514
    %607 = vst.msk [vmem:[%s4 + $0x20] sm:$0xff] %vm474, %v516
    %608 = vst.msk [vmem:[%s4 + $0x28] sm:$0xff] %vm474, %v518
    %609 = vst.msk [vmem:[%s4 + $0x30] sm:$0xff] %vm474, %v520
    %610 = vst.msk [vmem:[%s4 + $0x38] sm:$0xff] %vm474, %v522
    %611 = vst.msk [vmem:[%s4 + $0x40] sm:$0xff] %vm474, %v524
    %612 = vst.msk [vmem:[%s4 + $0x48] sm:$0xff] %vm474, %v526
    %613 = vst.msk [vmem:[%s4 + $0x50] sm:$0xff] %vm474, %v528
    %614 = vst.msk [vmem:[%s4 + $0x58] sm:$0xff] %vm474, %v530
    %615 = vst.msk [vmem:[%s4 + $0x60] sm:$0xff] %vm474, %v532
    %616 = vst.msk [vmem:[%s4 + $0x68] sm:$0xff] %vm474, %v534
    %617 = vst.msk [vmem:[%s4 + $0x70] sm:$0xff] %vm474, %v536
    %618 = vst.msk [vmem:[%s4 + $0x78] sm:$0xff] %vm474, %v538
    %619 = vst.msk [vmem:[%s4 + $0x80] sm:$0xff] %vm474, %v540
    %620 = vst.msk [vmem:[%s4 + $0x88] sm:$0xff] %vm474, %v542
    %621 = vst.msk [vmem:[%s4 + $0x90] sm:$0xff] %vm474, %v544
    %622 = vst.msk [vmem:[%s4 + $0x98] sm:$0xff] %vm474, %v546
    %623 = vst.msk [vmem:[%s4 + $0xa0] sm:$0xff] %vm474, %v548
    %624 = vst.msk [vmem:[%s4 + $0xa8] sm:$0xff] %vm474, %v550
    %625 = vst.msk [vmem:[%s4 + $0xb0] sm:$0xff] %vm474, %v552
    %626 = vst.msk [vmem:[%s4 + $0xb8] sm:$0xff] %vm474, %v554
    %627 = vst.msk [vmem:[%s4 + $0xc0] sm:$0xff] %vm474, %v556
    %628 = vst.msk [vmem:[%s4 + $0xc8] sm:$0xff] %vm474, %v558
    %629 = vst.msk [vmem:[%s4 + $0xd0] sm:$0xff] %vm474, %v560
    %630 = vst.msk [vmem:[%s4 + $0xd8] sm:$0xff] %vm474, %v562
    %631 = vst.msk [vmem:[%s4 + $0xe0] sm:$0xff] %vm474, %v564
    %632 = vst.msk [vmem:[%s4 + $0xe8] sm:$0xff] %vm474, %v566
    %633 = vst.msk [vmem:[%s4 + $0xf0] sm:$0xff] %vm474, %v568
    %634 = vst.msk [vmem:[%s4 + $0xf8] sm:$0xff] %vm474, %v570
    %v635 = vpack.c.bf16 %v223, %v220
    %v636 = vpack.c.bf16 %v231, %v228
    %v637 = vpack.c.bf16 %v239, %v236
    %v638 = vpack.c.bf16 %v247, %v244
    %v639 = vpack.c.bf16 %v255, %v252
    %v640 = vpack.c.bf16 %v263, %v260
    %v641 = vpack.c.bf16 %v271, %v268
    %v642 = vpack.c.bf16 %v279, %v276
    %v643 = vpack.c.bf16 %v287, %v284
    %v644 = vpack.c.bf16 %v295, %v292
    %v645 = vpack.c.bf16 %v303, %v300
    %v646 = vpack.c.bf16 %v311, %v308
    %v647 = vpack.c.bf16 %v319, %v316
    %v648 = vpack.c.bf16 %v327, %v324
    %v649 = vpack.c.bf16 %v335, %v332
    %v650 = vpack.c.bf16 %v343, %v340
    %v667 = vunpack.c.l.b16 %v635
    %v668 = vunpack.c.h.b16 %v635
    %v669 = vunpack.c.l.b16 %v636
    %v670 = vunpack.c.h.b16 %v636
    %v671 = vunpack.c.l.b16 %v637
    %v672 = vunpack.c.h.b16 %v637
    %v673 = vunpack.c.l.b16 %v638
    %v674 = vunpack.c.h.b16 %v638
    %v675 = vunpack.c.l.b16 %v639
    %v676 = vunpack.c.h.b16 %v639
    %v677 = vunpack.c.l.b16 %v640
    %v678 = vunpack.c.h.b16 %v640
    %v679 = vunpack.c.l.b16 %v641
    %v680 = vunpack.c.h.b16 %v641
    %v681 = vunpack.c.l.b16 %v642
    %v682 = vunpack.c.h.b16 %v642
    %v683 = vunpack.c.l.b16 %v643
    %v684 = vunpack.c.h.b16 %v643
    %v685 = vunpack.c.l.b16 %v644
    %v686 = vunpack.c.h.b16 %v644
    %v687 = vunpack.c.l.b16 %v645
    %v688 = vunpack.c.h.b16 %v645
    %v689 = vunpack.c.l.b16 %v646
    %v690 = vunpack.c.h.b16 %v646
    %v691 = vunpack.c.l.b16 %v647
    %v692 = vunpack.c.h.b16 %v647
    %v693 = vunpack.c.l.b16 %v648
    %v694 = vunpack.c.h.b16 %v648
    %v695 = vunpack.c.l.b16 %v649
    %v696 = vunpack.c.h.b16 %v649
    %v697 = vunpack.c.l.b16 %v650
    %v698 = vunpack.c.h.b16 %v650
    %v699 = vpack.c.b16 %v667, %v667
    %v700 = vpack.c.b16 %v668, %v668
    %v701 = vpack.c.b16 %v669, %v669
    %v702 = vpack.c.b16 %v670, %v670
    %v703 = vpack.c.b16 %v671, %v671
    %v704 = vpack.c.b16 %v672, %v672
    %v705 = vpack.c.b16 %v673, %v673
    %v706 = vpack.c.b16 %v674, %v674
    %v707 = vpack.c.b16 %v675, %v675
    %v708 = vpack.c.b16 %v676, %v676
    %v709 = vpack.c.b16 %v677, %v677
    %v710 = vpack.c.b16 %v678, %v678
    %v711 = vpack.c.b16 %v679, %v679
    %v712 = vpack.c.b16 %v680, %v680
    %v713 = vpack.c.b16 %v681, %v681
    %v714 = vpack.c.b16 %v682, %v682
    %v715 = vpack.c.b16 %v683, %v683
    %v716 = vpack.c.b16 %v684, %v684
    %v717 = vpack.c.b16 %v685, %v685
    %v718 = vpack.c.b16 %v686, %v686
    %v719 = vpack.c.b16 %v687, %v687
    %v720 = vpack.c.b16 %v688, %v688
    %v721 = vpack.c.b16 %v689, %v689
    %v722 = vpack.c.b16 %v690, %v690
    %v723 = vpack.c.b16 %v691, %v691
    %v724 = vpack.c.b16 %v692, %v692
    %v725 = vpack.c.b16 %v693, %v693
    %v726 = vpack.c.b16 %v694, %v694
    %v727 = vpack.c.b16 %v695, %v695
    %v728 = vpack.c.b16 %v696, %v696
    %v729 = vpack.c.b16 %v697, %v697
    %v730 = vpack.c.b16 %v698, %v698
    %763 = vst [vmem:[#allocation2] sm:$0xf] %v699
    %764 = vst [vmem:[#allocation2 + $0x4] sm:$0xf] %v700
    %765 = vst [vmem:[#allocation2 + $0x8] sm:$0xf] %v701
    %766 = vst [vmem:[#allocation2 + $0xc] sm:$0xf] %v702
    %767 = vst [vmem:[#allocation2 + $0x10] sm:$0xf] %v703
    %768 = vst [vmem:[#allocation2 + $0x14] sm:$0xf] %v704
    %769 = vst [vmem:[#allocation2 + $0x18] sm:$0xf] %v705
    %770 = vst [vmem:[#allocation2 + $0x1c] sm:$0xf] %v706
    %771 = vst [vmem:[#allocation2 + $0x20] sm:$0xf] %v707
    %772 = vst [vmem:[#allocation2 + $0x24] sm:$0xf] %v708
    %773 = vst [vmem:[#allocation2 + $0x28] sm:$0xf] %v709
    %774 = vst [vmem:[#allocation2 + $0x2c] sm:$0xf] %v710
    %775 = vst [vmem:[#allocation2 + $0x30] sm:$0xf] %v711
    %776 = vst [vmem:[#allocation2 + $0x34] sm:$0xf] %v712
    %777 = vst [vmem:[#allocation2 + $0x38] sm:$0xf] %v713
    %778 = vst [vmem:[#allocation2 + $0x3c] sm:$0xf] %v714
    %779 = vst [vmem:[#allocation2 + $0x40] sm:$0xf] %v715
    %780 = vst [vmem:[#allocation2 + $0x44] sm:$0xf] %v716
    %781 = vst [vmem:[#allocation2 + $0x48] sm:$0xf] %v717
    %782 = vst [vmem:[#allocation2 + $0x4c] sm:$0xf] %v718
    %783 = vst [vmem:[#allocation2 + $0x50] sm:$0xf] %v719
    %784 = vst [vmem:[#allocation2 + $0x54] sm:$0xf] %v720
    %785 = vst [vmem:[#allocation2 + $0x58] sm:$0xf] %v721
    %786 = vst [vmem:[#allocation2 + $0x5c] sm:$0xf] %v722
    %787 = vst [vmem:[#allocation2 + $0x60] sm:$0xf] %v723
    %788 = vst [vmem:[#allocation2 + $0x64] sm:$0xf] %v724
    %789 = vst [vmem:[#allocation2 + $0x68] sm:$0xf] %v725
    %790 = vst [vmem:[#allocation2 + $0x6c] sm:$0xf] %v726
    %791 = vst [vmem:[#allocation2 + $0x70] sm:$0xf] %v727
    %792 = vst [vmem:[#allocation2 + $0x74] sm:$0xf] %v728
    %793 = vst [vmem:[#allocation2 + $0x78] sm:$0xf] %v729
    %794 = vst [vmem:[#allocation2 + $0x7c] sm:$0xf] %v730
    // Predicated region
    $region10: #{tpu_custom_call.1} parent=1 // pred_check
      _
    $region11: #{tpu_custom_call.1} parent=1 // pred_check_branch
      %796 = sbr.rel (0) target = $region13
    $region12: #{tpu_custom_call.1} parent=1 // pred_region
      %s798 = ssub.s32 2048, 2048
      %799 = vsyncadd [#allocation3], %s798
      %s800 = sshll.u32 [#allocation2], 4
      %s801 = int_to_ptr.vmem [resolvable:$true] %s800
      %806 = dma.vmem_to_hbm [thread:$0]  %s801, 2048, %s2, [#allocation3], 64, 64, 4
    $region13: #{tpu_custom_call.1} parent=1 // pred_fallthru
      _
    // Predicated region
    $region14: #{tpu_custom_call.1} parent=1 // pred_check
      _
    $region15: #{tpu_custom_call.1} parent=1 // pred_check_branch
      %808 = sbr.rel (0) target = $region17
    $region16: #{tpu_custom_call.1} parent=1 // pred_region
      _
    $region17: #{tpu_custom_call.1} parent=1 // pred_fallthru
      _
    // Predicated region
    $region18: #{tpu_custom_call.1} parent=1 // pred_check
      _
    $region19: #{tpu_custom_call.1} parent=1 // pred_check_branch
      %810 = sbr.rel (0) target = $region21
    $region20: #{tpu_custom_call.1} parent=1 // pred_region
      _
    $region21: #{tpu_custom_call.1} parent=1 // pred_fallthru
      _
    // Predicated region
    $region22: #{tpu_custom_call.1} parent=1 // pred_check
      _
    $region23: #{tpu_custom_call.1} parent=1 // pred_check_branch
      %812 = sbr.rel (0) target = $region25
    $region24: #{tpu_custom_call.1} parent=1 // pred_region
      %813 = dma.done [#allocation3], 2048
    $region25: #{tpu_custom_call.1} parent=1 // pred_fallthru
      _
    // Predicated region
    $region26: #{tpu_custom_call.1} parent=1 // pred_check
      _
    $region27: #{tpu_custom_call.1} parent=1 // pred_check_branch
      %815 = sbr.rel (0) target = $region29
    $region28: #{tpu_custom_call.1} parent=1 // pred_region
      _
    $region29: #{tpu_custom_call.1} parent=1 // pred_fallthru
      _
    // Predicated region
    $region30: #{tpu_custom_call.1} parent=1 // pred_check
      _
    $region31: #{tpu_custom_call.1} parent=1 // pred_check_branch
      %817 = sbr.rel (0) target = $region33
    $region32: #{tpu_custom_call.1} parent=1 // pred_region
      _
    $region33: #{tpu_custom_call.1} parent=1 // pred_fallthru
      _
    %818 = vsyncpa [#allocation3], 1

</llo_original>
